<compile_context>
chip_gen: v5e
topology: v5e:2x2
jax: 0.10.0
libtpu: 0.0.40
codegen_flags: <defaults>
</compile_context>

<pallas_src>
import functools
import math

import jax
import jax.numpy as jnp
from jax import lax
from jax.experimental import pallas as pl
from jax.experimental.pallas import tpu as pltpu

# Small, module-consistent shapes.
BATCH, SEQ, D_MODEL, N_HID = 2, 8, 32, 16
DT_RANK = max(D_MODEL // 16, 1)          # = 2
DT_MIN, DT_MAX = 1e-3, 1e-1
LANE = 128                               # TPU lane width; output / dt_pre column padding


def _softplus(x):
    # numerically stable softplus, used identically in kernel and reference
    return jnp.maximum(x, 0.0) + jnp.log1p(jnp.exp(-jnp.abs(x)))


def _segment_scan(a, b, seq):
    """Inclusive scan h_t = a_t * h_{t-1} + b_t (h_{-1}=0) along axis 0 of (seq, DN) arrays.

    Hillis-Steele over full vregs: ceil(log2(seq)) steps.  For seq == 8 (the f32 sublane
    height) every pltpu.roll is a pure in-vreg sublane rotation; wrapped-in rows are masked
    to the identity element (a=1, b=0) of the affine composition.
    """
    t_idx = lax.broadcasted_iota(jnp.int32, a.shape, 0)
    shift = 1
    while shift < seq:
        wrapped = t_idx < shift
        b_prev = jnp.where(wrapped, 0.0, pltpu.roll(b, shift, axis=0))
        b = a * b_prev + b
        if shift * 2 < seq:             # the final 'a' update is never consumed
            a_prev = jnp.where(wrapped, 1.0, pltpu.roll(a, shift, axis=0))
            a = a * a_prev
        shift *= 2
    return b


def s6_kernel(xp_ref, wbig_ref, bbig_ref, ra_ref, sel_ref, dpad_ref, o_ref,
              *, batch, seq, d_model, n_hid):
    DN = d_model * n_hid

    xp = xp_ref[...]                                          # (B*L, 128) f32, lanes >= D are 0
    x = xp[:, :d_model]                                       # (B*L, D)

    # --- MXU pass 1: one fused bf16 projection for every x-linear quantity -----------------
    # columns: [0, 128)              dt_pre (D real + zero pad)
    #          [128, 128+DN)         x[r,d] / A[d,n]      at lane 128 + d*N + n
    #          [128+DN, 128+2DN)     B[r,n]               at lane ...
    #          [128+2DN, 128+3DN)    C[r,n]               at lane ...
    proj = jnp.dot(x.astype(jnp.bfloat16), wbig_ref[...],
                   preferred_element_type=jnp.float32) + bbig_ref[...]
    dt_pre   = proj[:, :d_model]
    x_over_a = proj[:, LANE:LANE + DN]
    b_tile   = proj[:, LANE + DN:LANE + 2 * DN]
    c_tile   = proj[:, LANE + 2 * DN:LANE + 3 * DN]

    # --- discretization (all elementwise math stays f32) -----------------------------------
    dt = jnp.clip(_softplus(dt_pre), 1e-7, 1e6)               # (B*L, D)
    # MXU pass 2: broadcast d -> lane d*N+n and scale by A:  tmp[r, d*N+n] = A[d,n] * dt[r,d]
    tmp = jnp.dot(dt.astype(jnp.bfloat16), ra_ref[...],
                  preferred_element_type=jnp.float32)         # (B*L, D*N)
    a_bar = jnp.exp(tmp)
    # B_bar * x = (exp(A*dt)-1)/A * B * x  (the dt of delta_B cancels against tmp); guard
    # tiny |A*dt| where exp(t)-1 would cancel catastrophically (expm1(t) ~= t).
    em1 = jnp.where(jnp.abs(tmp) < 1e-4, tmp, a_bar - 1.0)
    bx = em1 * x_over_a * b_tile                              # consumes tmp/x_over_a/b_tile early

    # --- parallel scan over the sequence (3 roll steps per batch segment, all in vregs) ----
    hs_parts = [
        _segment_scan(a_bar[bi * seq:(bi + 1) * seq, :],
                      bx[bi * seq:(bi + 1) * seq, :], seq)
        for bi in range(batch)
    ]
    hs = hs_parts[0] if batch == 1 else jnp.concatenate(hs_parts, axis=0)   # (B*L, D*N)

    # --- MXU pass 3: contract over n; add the exact f32 skip term; lane-dense store --------
    y = jnp.dot((hs * c_tile).astype(jnp.bfloat16), sel_ref[...],
                preferred_element_type=jnp.float32)           # (B*L, 128), lanes >= D are 0
    o_ref[...] = (y + dpad_ref[...] * xp).astype(o_ref.dtype)


def s6_prepare(params):
    """Fold the module parameters into the kernel's constant operands (run once at init)."""
    Wbc, bbc, W1, b1, W2, b2, A, Dp = params
    D, N = A.shape
    DN = D * N
    f32 = jnp.float32
    assert D <= LANE

    # Delta network collapsed into a single affine map (exact low-rank expansion).
    W_dt = jnp.dot(W1, W2, precision="highest")                       # (D, D)
    b_dt = jnp.dot(b1, W2, precision="highest") + b2                  # (1, D)

    # 0/1 selector realizing the lane-dense d -> d*N+n broadcast on the MXU; S = R^T sums n.
    R = jnp.kron(jnp.eye(D, dtype=f32), jnp.ones((1, N), f32))        # (D, D*N)
    RA = (R * A.reshape(1, DN)).astype(jnp.bfloat16)                  # dt -> A*dt (A exact in bf16)
    RAinv = R * (1.0 / A).reshape(1, DN)                              # x -> x/A (S4D-real A has no zeros)

    # n -> d*N+n broadcast of the B/C projection is just column tiling of the weights.
    WB, WC = jnp.tile(Wbc[:, :N], (1, D)), jnp.tile(Wbc[:, N:], (1, D))     # (D, D*N)
    bB, bC = jnp.tile(bbc[:, :N], (1, D)), jnp.tile(bbc[:, N:], (1, D))     # (1, D*N)

    pad = ((0, 0), (0, LANE - D))
    Wbig = jnp.concatenate([jnp.pad(W_dt, pad), RAinv, WB, WC],
                           axis=1).astype(jnp.bfloat16)               # (D, 128 + 3*D*N)
    bbig = jnp.concatenate([jnp.pad(b_dt, pad), jnp.zeros((1, DN), f32), bB, bC],
                           axis=1).astype(f32)                        # bias stays f32 (post-MXU)
    S_pad = jnp.zeros((DN, LANE), f32).at[:, :D].set(R.T).astype(jnp.bfloat16)
    Dp_pad = jnp.pad(Dp.astype(f32), pad)                             # (1, 128)
    return Wbig, bbig, RA, S_pad, Dp_pad


@jax.jit
def s6_forward(x, consts):
    Wbig, bbig, RA, S_pad, Dp_pad = consts
    B_, L, D = x.shape
    DN = RA.shape[1]
    N = DN // D
    BL = B_ * L

    # Layout plumbing only: present x and the output as lane-dense 128-wide slabs.
    xp = jnp.pad(x.reshape(BL, D).astype(jnp.float32), ((0, 0), (0, LANE - D)))

    kernel = functools.partial(s6_kernel, batch=B_, seq=L, d_model=D, n_hid=N)
    grid_spec = pltpu.PrefetchScalarGridSpec(
        num_scalar_prefetch=0,
        grid=(1,),
        in_specs=[
            pl.BlockSpec(xp.shape, lambda i: (0, 0)),
            pl.BlockSpec(Wbig.shape, lambda i: (0, 0)),
            pl.BlockSpec(bbig.shape, lambda i: (0, 0)),
            pl.BlockSpec(RA.shape, lambda i: (0, 0)),
            pl.BlockSpec(S_pad.shape, lambda i: (0, 0)),
            pl.BlockSpec(Dp_pad.shape, lambda i: (0, 0)),
        ],
        out_specs=pl.BlockSpec((BL, LANE), lambda i: (0, 0)),
    )
    yp = pl.pallas_call(
        kernel,
        out_shape=jax.ShapeDtypeStruct((BL, LANE), jnp.float32),
        grid_spec=grid_spec,
        compiler_params=pltpu.CompilerParams(dimension_semantics=("arbitrary",)),
    )(xp, Wbig, bbig, RA, S_pad, Dp_pad)
    return yp[:, :D].reshape(B_, L, D)


def s6_reference(x, params):
    """Pure-JAX reference mirroring the PyTorch S6Block forward."""
    Wbc, bbc, W1, b1, W2, b2, A, Dp = params
    N = A.shape[1]
    bc = x @ Wbc + bbc[0]
    Bm, Cm = bc[..., :N], bc[..., N:]
    dt = jnp.clip(_softplus((x @ W1 + b1[0]) @ W2 + b2[0]), 1e-7, 1e6)
    tmp = A[None, None] * dt[..., None]
    A_bar = jnp.exp(tmp)
    B_bar = (A_bar - 1.0) * (dt[..., None] * Bm[..., None, :]) / tmp
    BX = B_bar * x[..., None]

    def step(h, inp):
        ab, bxv = inp
        h = ab * h + bxv
        return h, h

    h0 = jnp.zeros((x.shape[0], x.shape[2], N), jnp.float32)
    _, hs = lax.scan(step, h0, (jnp.moveaxis(A_bar, 1, 0), jnp.moveaxis(BX, 1, 0)))
    scan = jnp.moveaxis(hs, 0, 1)
    return jnp.sum(scan * Cm[..., None, :], axis=-1) + Dp[0] * x


if __name__ == "__main__":
    key = jax.random.PRNGKey(0)
    kx, k0, k1, k2, k3, k4, k5 = jax.random.split(key, 7)

    # Deterministic parameter initialization (shapes match the PyTorch module).
    bound = 1.0 / math.sqrt(D_MODEL)
    Wbc = jax.random.uniform(k0, (D_MODEL, 2 * N_HID), jnp.float32, -bound, bound)
    bbc = jax.random.uniform(k1, (1, 2 * N_HID), jnp.float32, -bound, bound)
    W1 = jax.random.uniform(k2, (D_MODEL, DT_RANK), jnp.float32, -bound, bound)
    b1 = jax.random.uniform(k3, (1, DT_RANK), jnp.float32, -bound, bound)
    dt_std = DT_RANK ** (-0.5)
    W2 = jax.random.uniform(k4, (DT_RANK, D_MODEL), jnp.float32, -dt_std, dt_std)
    # project.bias = inverse_softplus(dt), dt ~ logUniform(dt_min, dt_max)
    u = jax.random.uniform(k5, (D_MODEL,), jnp.float32)
    dt0 = jnp.exp(u * (math.log(DT_MAX) - math.log(DT_MIN)) + math.log(DT_MIN))
    dt0 = jnp.maximum(dt0, 1e-4)
    b2 = (dt0 + jnp.log(-jnp.expm1(-dt0))).reshape(1, D_MODEL).astype(jnp.float32)
    # S4D-Real init: A_n = -(n+1), repeated over model_dim (stored as (D, N))
    A = jnp.tile(-jnp.arange(1, N_HID + 1, dtype=jnp.float32)[None, :], (D_MODEL, 1))
    Dp = jnp.ones((1, D_MODEL), jnp.float32)

    params = (Wbc, bbc, W1, b1, W2, b2, A, Dp)
    x = jax.random.normal(kx, (BATCH, SEQ, D_MODEL), jnp.float32)

    consts = s6_prepare(params)        # hoisted: built once, reused for every forward call
    out = s6_forward(x, consts)
    out = jax.block_until_ready(out)

    ref = s6_reference(x, params)
    assert out.shape == (BATCH, SEQ, D_MODEL)
    # bf16 MXU operands (with f32 accumulation) introduce ~1e-3-level relative error vs the
    # f32 reference; 2e-2 tolerances keep the check robust while still catching any
    # structural error (wrong scan, wrong column layout, etc. would be O(0.1-1)).
    assert bool(jnp.allclose(out, ref, rtol=2e-2, atol=2e-2)), "mismatch vs reference"
    print("KERNEL_OK")
</pallas_src>

<mosaic_0001>
module attributes {stable_mosaic.version = 11 : i64} {
  func.func @s6_kernel(%arg0: i32, %arg1: memref<16x128xf32, #tpu.memory_space<vmem>>, %arg2: memref<32x1664xbf16, #tpu.memory_space<vmem>>, %arg3: memref<1x1664xf32, #tpu.memory_space<vmem>>, %arg4: memref<32x512xbf16, #tpu.memory_space<vmem>>, %arg5: memref<512x128xbf16, #tpu.memory_space<vmem>>, %arg6: memref<1x128xf32, #tpu.memory_space<vmem>>, %arg7: memref<16x128xf32, #tpu.memory_space<vmem>>) attributes {dimension_semantics = [#tpu.dimension_semantics<arbitrary>], iteration_bounds = array<i64: 1>, scalar_prefetch = 0 : i64, scratch_operands = 0 : i64, tpu.core_type = #tpu.core_type<tc>, window_params = [{pipeline_mode = #tpu.pipeline_mode<synchronous>, transform_indices = @transform_0, window_bounds = array<i64: 16, 128>}, {pipeline_mode = #tpu.pipeline_mode<synchronous>, transform_indices = @transform_1, window_bounds = array<i64: 32, 1664>}, {pipeline_mode = #tpu.pipeline_mode<synchronous>, transform_indices = @transform_2, window_bounds = array<i64: 1, 1664>}, {pipeline_mode = #tpu.pipeline_mode<synchronous>, transform_indices = @transform_3, window_bounds = array<i64: 32, 512>}, {pipeline_mode = #tpu.pipeline_mode<synchronous>, transform_indices = @transform_4, window_bounds = array<i64: 512, 128>}, {pipeline_mode = #tpu.pipeline_mode<synchronous>, transform_indices = @transform_5, window_bounds = array<i64: 1, 128>}, {pipeline_mode = #tpu.pipeline_mode<synchronous>, transform_indices = @transform_6, window_bounds = array<i64: 16, 128>}]} {
    %c0 = arith.constant 0 : index
    %c0_0 = arith.constant 0 : index
    %0 = vector.load %arg1[%c0, %c0_0] : memref<16x128xf32, #tpu.memory_space<vmem>>, vector<16x128xf32>
    %1 = vector.extract_strided_slice %0 {offsets = [0, 0], sizes = [16, 32], strides = [1, 1]} : vector<16x128xf32> to vector<16x32xf32>
    %2 = arith.truncf %1 : vector<16x32xf32> to vector<16x32xbf16>
    %c0_1 = arith.constant 0 : index
    %c0_2 = arith.constant 0 : index
    %3 = vector.load %arg2[%c0_1, %c0_2] : memref<32x1664xbf16, #tpu.memory_space<vmem>>, vector<32x1664xbf16>
    %cst = arith.constant dense<0.000000e+00> : vector<16x1664xf32>
    %4 = tpu.matmul %2, %3, %cst {dimension_numbers = #tpu.dot_dimension_numbers<[1], [0], [0], [1], [0, 0, 1, 1], [], []>} : vector<16x32xbf16>, vector<32x1664xbf16>, vector<16x1664xf32> -> vector<16x1664xf32>
    %c0_3 = arith.constant 0 : index
    %c0_4 = arith.constant 0 : index
    %5 = vector.load %arg3[%c0_3, %c0_4] : memref<1x1664xf32, #tpu.memory_space<vmem>>, vector<1x1664xf32>
    %6 = vector.broadcast %5 : vector<1x1664xf32> to vector<16x1664xf32>
    %7 = arith.addf %4, %6 : vector<16x1664xf32>
    %8 = vector.extract_strided_slice %7 {offsets = [0, 0], sizes = [16, 32], strides = [1, 1]} : vector<16x1664xf32> to vector<16x32xf32>
    %9 = vector.extract_strided_slice %7 {offsets = [0, 128], sizes = [16, 512], strides = [1, 1]} : vector<16x1664xf32> to vector<16x512xf32>
    %10 = vector.extract_strided_slice %7 {offsets = [0, 640], sizes = [16, 512], strides = [1, 1]} : vector<16x1664xf32> to vector<16x512xf32>
    %11 = vector.extract_strided_slice %7 {offsets = [0, 1152], sizes = [16, 512], strides = [1, 1]} : vector<16x1664xf32> to vector<16x512xf32>
    %cst_5 = arith.constant 0.000000e+00 : f32
    %12 = vector.broadcast %cst_5 : f32 to vector<16x32xf32>
    %13 = arith.maximumf %8, %12 : vector<16x32xf32>
    %14 = math.absf %8 : vector<16x32xf32>
    %cst_6 = arith.constant 0.000000e+00 : f32
    %15 = vector.broadcast %cst_6 : f32 to vector<16x32xf32>
    %16 = arith.subf %15, %14 : vector<16x32xf32>
    %17 = math.exp %16 : vector<16x32xf32>
    %18 = math.log1p %17 : vector<16x32xf32>
    %19 = arith.addf %13, %18 : vector<16x32xf32>
    %cst_7 = arith.constant 1.000000e-07 : f32
    %cst_8 = arith.constant 1.000000e+06 : f32
    %20 = vector.broadcast %cst_7 : f32 to vector<16x32xf32>
    %21 = arith.maximumf %20, %19 : vector<16x32xf32>
    %22 = vector.broadcast %cst_8 : f32 to vector<16x32xf32>
    %23 = arith.minimumf %22, %21 : vector<16x32xf32>
    %24 = arith.truncf %23 : vector<16x32xf32> to vector<16x32xbf16>
    %c0_9 = arith.constant 0 : index
    %c0_10 = arith.constant 0 : index
    %25 = vector.load %arg4[%c0_9, %c0_10] : memref<32x512xbf16, #tpu.memory_space<vmem>>, vector<32x512xbf16>
    %cst_11 = arith.constant dense<0.000000e+00> : vector<16x512xf32>
    %26 = tpu.matmul %24, %25, %cst_11 {dimension_numbers = #tpu.dot_dimension_numbers<[1], [0], [0], [1], [0, 0, 1, 1], [], []>} : vector<16x32xbf16>, vector<32x512xbf16>, vector<16x512xf32> -> vector<16x512xf32>
    %27 = math.exp %26 : vector<16x512xf32>
    %28 = math.absf %26 : vector<16x512xf32>
    %cst_12 = arith.constant 9.99999974E-5 : f32
    %29 = vector.broadcast %cst_12 : f32 to vector<16x512xf32>
    %30 = arith.cmpf olt, %28, %29 : vector<16x512xf32>
    %cst_13 = arith.constant 1.000000e+00 : f32
    %31 = vector.broadcast %cst_13 : f32 to vector<16x512xf32>
    %32 = arith.subf %27, %31 : vector<16x512xf32>
    %33 = arith.select %30, %26, %32 : vector<16x512xi1>, vector<16x512xf32>
    %34 = arith.mulf %33, %9 : vector<16x512xf32>
    %35 = arith.mulf %34, %10 : vector<16x512xf32>
    %36 = vector.extract_strided_slice %27 {offsets = [0, 0], sizes = [8, 512], strides = [1, 1]} : vector<16x512xf32> to vector<8x512xf32>
    %37 = vector.extract_strided_slice %35 {offsets = [0, 0], sizes = [8, 512], strides = [1, 1]} : vector<16x512xf32> to vector<8x512xf32>
    %38 = tpu.iota {dimensions = array<i32: 0>} : vector<8x512xi32>
    %c1_i32 = arith.constant 1 : i32
    %39 = vector.broadcast %c1_i32 : i32 to vector<8x512xi32>
    %40 = arith.cmpi slt, %38, %39 : vector<8x512xi32>
    %c1_i32_14 = arith.constant 1 : i32
    %41 = tpu.dynamic_rotate %37 by %c1_i32_14 dim 0 : vector<8x512xf32>, i32 -> vector<8x512xf32>
    %cst_15 = arith.constant 0.000000e+00 : f32
    %42 = vector.broadcast %cst_15 : f32 to vector<8x512xf32>
    %43 = arith.select %40, %42, %41 : vector<8x512xi1>, vector<8x512xf32>
    %44 = arith.mulf %36, %43 : vector<8x512xf32>
    %45 = arith.addf %44, %37 : vector<8x512xf32>
    %c1_i32_16 = arith.constant 1 : i32
    %46 = tpu.dynamic_rotate %36 by %c1_i32_16 dim 0 : vector<8x512xf32>, i32 -> vector<8x512xf32>
    %cst_17 = arith.constant 1.000000e+00 : f32
    %47 = vector.broadcast %cst_17 : f32 to vector<8x512xf32>
    %48 = arith.select %40, %47, %46 : vector<8x512xi1>, vector<8x512xf32>
    %49 = arith.mulf %36, %48 : vector<8x512xf32>
    %c2_i32 = arith.constant 2 : i32
    %50 = vector.broadcast %c2_i32 : i32 to vector<8x512xi32>
    %51 = arith.cmpi slt, %38, %50 : vector<8x512xi32>
    %c2_i32_18 = arith.constant 2 : i32
    %52 = tpu.dynamic_rotate %45 by %c2_i32_18 dim 0 : vector<8x512xf32>, i32 -> vector<8x512xf32>
    %cst_19 = arith.constant 0.000000e+00 : f32
    %53 = vector.broadcast %cst_19 : f32 to vector<8x512xf32>
    %54 = arith.select %51, %53, %52 : vector<8x512xi1>, vector<8x512xf32>
    %55 = arith.mulf %49, %54 : vector<8x512xf32>
    %56 = arith.addf %55, %45 : vector<8x512xf32>
    %c2_i32_20 = arith.constant 2 : i32
    %57 = tpu.dynamic_rotate %49 by %c2_i32_20 dim 0 : vector<8x512xf32>, i32 -> vector<8x512xf32>
    %cst_21 = arith.constant 1.000000e+00 : f32
    %58 = vector.broadcast %cst_21 : f32 to vector<8x512xf32>
    %59 = arith.select %51, %58, %57 : vector<8x512xi1>, vector<8x512xf32>
    %60 = arith.mulf %49, %59 : vector<8x512xf32>
    %c4_i32 = arith.constant 4 : i32
    %61 = vector.broadcast %c4_i32 : i32 to vector<8x512xi32>
    %62 = arith.cmpi slt, %38, %61 : vector<8x512xi32>
    %c4_i32_22 = arith.constant 4 : i32
    %63 = tpu.dynamic_rotate %56 by %c4_i32_22 dim 0 : vector<8x512xf32>, i32 -> vector<8x512xf32>
    %cst_23 = arith.constant 0.000000e+00 : f32
    %64 = vector.broadcast %cst_23 : f32 to vector<8x512xf32>
    %65 = arith.select %62, %64, %63 : vector<8x512xi1>, vector<8x512xf32>
    %66 = arith.mulf %60, %65 : vector<8x512xf32>
    %67 = arith.addf %66, %56 : vector<8x512xf32>
    %68 = vector.extract_strided_slice %27 {offsets = [8, 0], sizes = [8, 512], strides = [1, 1]} : vector<16x512xf32> to vector<8x512xf32>
    %69 = vector.extract_strided_slice %35 {offsets = [8, 0], sizes = [8, 512], strides = [1, 1]} : vector<16x512xf32> to vector<8x512xf32>
    %70 = tpu.iota {dimensions = array<i32: 0>} : vector<8x512xi32>
    %c1_i32_24 = arith.constant 1 : i32
    %71 = vector.broadcast %c1_i32_24 : i32 to vector<8x512xi32>
    %72 = arith.cmpi slt, %70, %71 : vector<8x512xi32>
    %c1_i32_25 = arith.constant 1 : i32
    %73 = tpu.dynamic_rotate %69 by %c1_i32_25 dim 0 : vector<8x512xf32>, i32 -> vector<8x512xf32>
    %cst_26 = arith.constant 0.000000e+00 : f32
    %74 = vector.broadcast %cst_26 : f32 to vector<8x512xf32>
    %75 = arith.select %72, %74, %73 : vector<8x512xi1>, vector<8x512xf32>
    %76 = arith.mulf %68, %75 : vector<8x512xf32>
    %77 = arith.addf %76, %69 : vector<8x512xf32>
    %c1_i32_27 = arith.constant 1 : i32
    %78 = tpu.dynamic_rotate %68 by %c1_i32_27 dim 0 : vector<8x512xf32>, i32 -> vector<8x512xf32>
    %cst_28 = arith.constant 1.000000e+00 : f32
    %79 = vector.broadcast %cst_28 : f32 to vector<8x512xf32>
    %80 = arith.select %72, %79, %78 : vector<8x512xi1>, vector<8x512xf32>
    %81 = arith.mulf %68, %80 : vector<8x512xf32>
    %c2_i32_29 = arith.constant 2 : i32
    %82 = vector.broadcast %c2_i32_29 : i32 to vector<8x512xi32>
    %83 = arith.cmpi slt, %70, %82 : vector<8x512xi32>
    %c2_i32_30 = arith.constant 2 : i32
    %84 = tpu.dynamic_rotate %77 by %c2_i32_30 dim 0 : vector<8x512xf32>, i32 -> vector<8x512xf32>
    %cst_31 = arith.constant 0.000000e+00 : f32
    %85 = vector.broadcast %cst_31 : f32 to vector<8x512xf32>
    %86 = arith.select %83, %85, %84 : vector<8x512xi1>, vector<8x512xf32>
    %87 = arith.mulf %81, %86 : vector<8x512xf32>
    %88 = arith.addf %87, %77 : vector<8x512xf32>
    %c2_i32_32 = arith.constant 2 : i32
    %89 = tpu.dynamic_rotate %81 by %c2_i32_32 dim 0 : vector<8x512xf32>, i32 -> vector<8x512xf32>
    %cst_33 = arith.constant 1.000000e+00 : f32
    %90 = vector.broadcast %cst_33 : f32 to vector<8x512xf32>
    %91 = arith.select %83, %90, %89 : vector<8x512xi1>, vector<8x512xf32>
    %92 = arith.mulf %81, %91 : vector<8x512xf32>
    %c4_i32_34 = arith.constant 4 : i32
    %93 = vector.broadcast %c4_i32_34 : i32 to vector<8x512xi32>
    %94 = arith.cmpi slt, %70, %93 : vector<8x512xi32>
    %c4_i32_35 = arith.constant 4 : i32
    %95 = tpu.dynamic_rotate %88 by %c4_i32_35 dim 0 : vector<8x512xf32>, i32 -> vector<8x512xf32>
    %cst_36 = arith.constant 0.000000e+00 : f32
    %96 = vector.broadcast %cst_36 : f32 to vector<8x512xf32>
    %97 = arith.select %94, %96, %95 : vector<8x512xi1>, vector<8x512xf32>
    %98 = arith.mulf %92, %97 : vector<8x512xf32>
    %99 = arith.addf %98, %88 : vector<8x512xf32>
    %100 = tpu.concatenate %67, %99 in 0 : vector<8x512xf32>, vector<8x512xf32> -> vector<16x512xf32>
    %101 = arith.mulf %100, %11 : vector<16x512xf32>
    %102 = arith.truncf %101 : vector<16x512xf32> to vector<16x512xbf16>
    %c0_37 = arith.constant 0 : index
    %c0_38 = arith.constant 0 : index
    %103 = vector.load %arg5[%c0_37, %c0_38] : memref<512x128xbf16, #tpu.memory_space<vmem>>, vector<512x128xbf16>
    %cst_39 = arith.constant dense<0.000000e+00> : vector<16x128xf32>
    %104 = tpu.matmul %102, %103, %cst_39 {dimension_numbers = #tpu.dot_dimension_numbers<[1], [0], [0], [1], [0, 0, 1, 1], [], []>} : vector<16x512xbf16>, vector<512x128xbf16>, vector<16x128xf32> -> vector<16x128xf32>
    %c0_40 = arith.constant 0 : index
    %c0_41 = arith.constant 0 : index
    %105 = vector.load %arg6[%c0_40, %c0_41] : memref<1x128xf32, #tpu.memory_space<vmem>>, vector<1x128xf32>
    %106 = vector.broadcast %105 : vector<1x128xf32> to vector<16x128xf32>
    %107 = arith.mulf %106, %0 : vector<16x128xf32>
    %108 = arith.addf %104, %107 : vector<16x128xf32>
    %c0_42 = arith.constant 0 : index
    %c0_43 = arith.constant 0 : index
    %109 = vector.load %arg7[%c0_42, %c0_43] : memref<16x128xf32, #tpu.memory_space<vmem>>, vector<16x128xf32>
    tpu.vector_store %arg7[%c0_42, %c0_43], %108 {strides = array<i32>} : memref<16x128xf32, #tpu.memory_space<vmem>>, vector<16x128xf32>,
    return
  }
  func.func @transform_0(%arg0: i32) -> (i32, i32) {
    %c0_i32 = arith.constant 0 : i32
    %c0_i32_0 = arith.constant 0 : i32
    %c0_i32_1 = arith.constant 0 : i32
    return %c0_i32, %c0_i32_0 : i32, i32
  }
  func.func @transform_1(%arg0: i32) -> (i32, i32) {
    %c0_i32 = arith.constant 0 : i32
    %c0_i32_0 = arith.constant 0 : i32
    %c0_i32_1 = arith.constant 0 : i32
    return %c0_i32, %c0_i32_0 : i32, i32
  }
  func.func @transform_2(%arg0: i32) -> (i32, i32) {
    %c0_i32 = arith.constant 0 : i32
    %c0_i32_0 = arith.constant 0 : i32
    %c0_i32_1 = arith.constant 0 : i32
    return %c0_i32, %c0_i32_0 : i32, i32
  }
  func.func @transform_3(%arg0: i32) -> (i32, i32) {
    %c0_i32 = arith.constant 0 : i32
    %c0_i32_0 = arith.constant 0 : i32
    %c0_i32_1 = arith.constant 0 : i32
    return %c0_i32, %c0_i32_0 : i32, i32
  }
  func.func @transform_4(%arg0: i32) -> (i32, i32) {
    %c0_i32 = arith.constant 0 : i32
    %c0_i32_0 = arith.constant 0 : i32
    %c0_i32_1 = arith.constant 0 : i32
    return %c0_i32, %c0_i32_0 : i32, i32
  }
  func.func @transform_5(%arg0: i32) -> (i32, i32) {
    %c0_i32 = arith.constant 0 : i32
    %c0_i32_0 = arith.constant 0 : i32
    %c0_i32_1 = arith.constant 0 : i32
    return %c0_i32, %c0_i32_0 : i32, i32
  }
  func.func @transform_6(%arg0: i32) -> (i32, i32) {
    %c0_i32 = arith.constant 0 : i32
    %c0_i32_0 = arith.constant 0 : i32
    %c0_i32_1 = arith.constant 0 : i32
    return %c0_i32, %c0_i32_0 : i32, i32
  }
}

</mosaic_0001>

<llo_original>
// kernel: s6_forward.1
$region0: #{s6_forward.1}
  #allocation0 [shape = 'u32[]', space=smem, size = 0x4, offset = 0x4, fixed_abs, tag = 'smem constant byte address 0x4 - core index']
  #allocation1 [shape = 'u32[72,128]{1,0:T(1,128)}', space=vmem, size = 0x9000, scoped, tag = 'internal scratch']
  %s0 = inlined_call_operand.vmem [shape: f32[16,128], index: 0, kind: input, shape index: {}]
  %s1 = inlined_call_operand.hbm [shape: bf16[32,1664], index: 1, kind: input, shape index: {}]
  %s2 = inlined_call_operand.vmem [shape: f32[1,1664], index: 2, kind: input, shape index: {}]
  %s3 = inlined_call_operand.hbm [shape: bf16[32,512], index: 3, kind: input, shape index: {}]
  %s4 = inlined_call_operand.hbm [shape: bf16[512,128], index: 4, kind: input, shape index: {}]
  %s5 = inlined_call_operand.vmem [shape: f32[1,128], index: 5, kind: input, shape index: {}]
  %s6 = inlined_call_operand.vmem [shape: f32[16,128], index: 6, kind: output, shape index: {}]
  %s7 = sld [smem:[#allocation0]]
  $region46: #{s6_forward.1} parent=0
    _
  %s9 = ssub.s32 1, %s7
  %s10 = scalar_select 0, %s9, %s7
  $region1: #{s6_forward.1} parent=0
    #allocation2 [shape = 'u8[106496]{0}', space=vmem, size = 0x1a000, scoped, tag = 'input window, operand 1, single buffered']
    #allocation3 [shape = 's32[1]{0}', space=sflag, size = 0x4, scoped, tag = 'scoped memory for s6_forward.1']
    #allocation4 [shape = 'u8[32768]{0}', space=vmem, size = 0x8000, scoped, tag = 'input window, operand 3, single buffered']
    #allocation5 [shape = 's32[1]{0}', space=sflag, size = 0x4, scoped, tag = 'scoped memory for s6_forward.1']
    #allocation6 [shape = 'u8[131072]{0}', space=vmem, size = 0x20000, scoped, tag = 'input window, operand 4, single buffered']
    %11 = vsyncpa [#allocation3], 0
    %12 = vsyncpa [#allocation5], 0
    // Predicated region
    $region2: #{s6_forward.1} parent=1 // pred_check
      _
    $region3: #{s6_forward.1} parent=1 // pred_check_branch
      %14 = sbr.rel (0) target = $region5
    $region4: #{s6_forward.1} parent=1 // pred_region
      _
    $region5: #{s6_forward.1} parent=1 // pred_fallthru
      _
    // Predicated region
    $region6: #{s6_forward.1} parent=1 // pred_check
      _
    $region7: #{s6_forward.1} parent=1 // pred_check_branch
      %16 = sbr.rel (0) target = $region9
    $region8: #{s6_forward.1} parent=1 // pred_region
      %18 = vsyncadd [#allocation3], 0
      %s19 = sshll.u32 %s1, 4
      %s20 = int_to_ptr.hbm [resolvable:$true] %s19
      %s21 = sshll.u32 [#allocation2], 4
      %s22 = int_to_ptr.vmem [resolvable:$true] %s21
      %27 = dma.hbm_to_vmem [thread:$0]  %s20, 3328, %s22, [#allocation3], 832, 832, 52
    $region9: #{s6_forward.1} parent=1 // pred_fallthru
      _
    // Predicated region
    $region10: #{s6_forward.1} parent=1 // pred_check
      _
    $region11: #{s6_forward.1} parent=1 // pred_check_branch
      %29 = sbr.rel (0) target = $region13
    $region12: #{s6_forward.1} parent=1 // pred_region
      _
    $region13: #{s6_forward.1} parent=1 // pred_fallthru
      _
    // Predicated region
    $region14: #{s6_forward.1} parent=1 // pred_check
      _
    $region15: #{s6_forward.1} parent=1 // pred_check_branch
      %31 = sbr.rel (0) target = $region17
    $region16: #{s6_forward.1} parent=1 // pred_region
      %33 = vsyncadd [#allocation5], 0
      %s34 = sshll.u32 %s3, 4
      %s35 = int_to_ptr.hbm [resolvable:$true] %s34
      %s36 = sshll.u32 [#allocation4], 4
      %s37 = int_to_ptr.vmem [resolvable:$true] %s36
      %42 = dma.hbm_to_vmem [thread:$0]  %s35, 1024, %s37, [#allocation5], 256, 256, 16
    $region17: #{s6_forward.1} parent=1 // pred_fallthru
      _
    // Predicated region
    $region18: #{s6_forward.1} parent=1 // pred_check
      _
    $region19: #{s6_forward.1} parent=1 // pred_check_branch
      %44 = sbr.rel (0) target = $region21
    $region20: #{s6_forward.1} parent=1 // pred_region
      %46 = vsyncadd [#allocation5], 0
      %s47 = sshll.u32 %s4, 4
      %s48 = int_to_ptr.hbm [resolvable:$true] %s47
      %s49 = sshll.u32 [#allocation6], 4
      %s50 = int_to_ptr.vmem [resolvable:$true] %s49
      %55 = dma.hbm_to_vmem [thread:$0]  %s48, 4096, %s50, [#allocation5], 64, 64, 4
    $region21: #{s6_forward.1} parent=1 // pred_fallthru
      _
    // Predicated region
    $region22: #{s6_forward.1} parent=1 // pred_check
      _
    $region23: #{s6_forward.1} parent=1 // pred_check_branch
      %57 = sbr.rel (0) target = $region25
    $region24: #{s6_forward.1} parent=1 // pred_region
      _
    $region25: #{s6_forward.1} parent=1 // pred_fallthru
      _
    // Predicated region
    $region26: #{s6_forward.1} parent=1 // pred_check
      _
    $region27: #{s6_forward.1} parent=1 // pred_check_branch
      %59 = sbr.rel (0) target = $region29
    $region28: #{s6_forward.1} parent=1 // pred_region
      %61 = dma.done [#allocation3], 3328
    $region29: #{s6_forward.1} parent=1 // pred_fallthru
      _
    // Predicated region
    $region30: #{s6_forward.1} parent=1 // pred_check
      _
    $region31: #{s6_forward.1} parent=1 // pred_check_branch
      %63 = sbr.rel (0) target = $region33
    $region32: #{s6_forward.1} parent=1 // pred_region
      %65 = dma.done [#allocation5], 1024
    $region33: #{s6_forward.1} parent=1 // pred_fallthru
      _
    // Predicated region
    $region34: #{s6_forward.1} parent=1 // pred_check
      _
    $region35: #{s6_forward.1} parent=1 // pred_check_branch
      %67 = sbr.rel (0) target = $region37
    $region36: #{s6_forward.1} parent=1 // pred_region
      %69 = dma.done [#allocation5], 4096
    $region37: #{s6_forward.1} parent=1 // pred_fallthru
      _
    %v71 = vld [vmem:[%s0] sm:$0xff]
    %v72 = vld [vmem:[%s0 + $0x8] sm:$0xff]
    %v73 = vpack.c.bf16 %v72, %v71
    %v74 = vld [vmem:[#allocation2] sm:$0xff]
    %v75 = vld [vmem:[#allocation2 + $0x8] sm:$0xff]
    %v76 = vld [vmem:[#allocation2 + $0x10] sm:$0xff]
    %v77 = vld [vmem:[#allocation2 + $0x18] sm:$0xff]
    %v78 = vld [vmem:[#allocation2 + $0x20] sm:$0xff]
    %v79 = vld [vmem:[#allocation2 + $0x28] sm:$0xff]
    %v80 = vld [vmem:[#allocation2 + $0x30] sm:$0xf]
    %v81 = vld [vmem:[#allocation2 + $0x34] sm:$0xff]
    %v82 = vld [vmem:[#allocation2 + $0x3c] sm:$0xff]
    %v83 = vld [vmem:[#allocation2 + $0x44] sm:$0xff]
    %v84 = vld [vmem:[#allocation2 + $0x4c] sm:$0xff]
    %v85 = vld [vmem:[#allocation2 + $0x54] sm:$0xff]
    %v86 = vld [vmem:[#allocation2 + $0x5c] sm:$0xff]
    %v87 = vld [vmem:[#allocation2 + $0x64] sm:$0xf]
    %v88 = vld [vmem:[#allocation2 + $0x68] sm:$0xff]
    %v89 = vld [vmem:[#allocation2 + $0x70] sm:$0xff]
    %v90 = vld [vmem:[#allocation2 + $0x78] sm:$0xff]
    %v91 = vld [vmem:[#allocation2 + $0x80] sm:$0xff]
    %v92 = vld [vmem:[#allocation2 + $0x88] sm:$0xff]
    %v93 = vld [vmem:[#allocation2 + $0x90] sm:$0xff]
    %v94 = vld [vmem:[#allocation2 + $0x98] sm:$0xf]
    %v95 = vld [vmem:[#allocation2 + $0x9c] sm:$0xff]
    %v96 = vld [vmem:[#allocation2 + $0xa4] sm:$0xff]
    %v97 = vld [vmem:[#allocation2 + $0xac] sm:$0xff]
    %v98 = vld [vmem:[#allocation2 + $0xb4] sm:$0xff]
    %v99 = vld [vmem:[#allocation2 + $0xbc] sm:$0xff]
    %v100 = vld [vmem:[#allocation2 + $0xc4] sm:$0xff]
    %v101 = vld [vmem:[#allocation2 + $0xcc] sm:$0xf]
    %v102 = vld [vmem:[%s2] sm:$0xff]
    %v103 = vld [vmem:[%s2 + $0x8] sm:$0x1f]
    %v106 = vperm.slane %v102, 0
    %v107 = vperm.slane %v102, 1
    %v108 = vperm.slane %v102, 2
    %v109 = vperm.slane %v102, 3
    %v110 = vperm.slane %v102, 4
    %v111 = vperm.slane %v102, 5
    %v112 = vperm.slane %v102, 6
    %v113 = vperm.slane %v102, 7
    %v114 = vperm.slane %v103, 0
    %v115 = vperm.slane %v103, 1
    %v116 = vperm.slane %v103, 2
    %v117 = vperm.slane %v103, 3
    %v118 = vperm.slane %v103, 4
    %v160 = vunpack.c.l.b16 %v74
    %v161 = vunpack.c.h.b16 %v74
    %v162 = vunpack.c.l.b16 %v75
    %v163 = vunpack.c.h.b16 %v75
    %v164 = vunpack.c.l.b16 %v76
    %v165 = vunpack.c.h.b16 %v76
    %v166 = vunpack.c.l.b16 %v77
    %v167 = vunpack.c.h.b16 %v77
    %v168 = vunpack.c.l.b16 %v78
    %v169 = vunpack.c.h.b16 %v78
    %v170 = vunpack.c.l.b16 %v79
    %v171 = vunpack.c.h.b16 %v79
    %v172 = vunpack.c.l.b16 %v80
    %v173 = vunpack.c.l.b16 %v81
    %v174 = vunpack.c.h.b16 %v81
    %v175 = vunpack.c.l.b16 %v82
    %v176 = vunpack.c.h.b16 %v82
    %v177 = vunpack.c.l.b16 %v83
    %v178 = vunpack.c.h.b16 %v83
    %v179 = vunpack.c.l.b16 %v84
    %v180 = vunpack.c.h.b16 %v84
    %v181 = vunpack.c.l.b16 %v85
    %v182 = vunpack.c.h.b16 %v85
    %v183 = vunpack.c.l.b16 %v86
    %v184 = vunpack.c.h.b16 %v86
    %v185 = vunpack.c.l.b16 %v87
    %v186 = vunpack.c.l.b16 %v88
    %v187 = vunpack.c.h.b16 %v88
    %v188 = vunpack.c.l.b16 %v89
    %v189 = vunpack.c.h.b16 %v89
    %v190 = vunpack.c.l.b16 %v90
    %v191 = vunpack.c.h.b16 %v90
    %v192 = vunpack.c.l.b16 %v91
    %v193 = vunpack.c.h.b16 %v91
    %v194 = vunpack.c.l.b16 %v92
    %v195 = vunpack.c.h.b16 %v92
    %v196 = vunpack.c.l.b16 %v93
    %v197 = vunpack.c.h.b16 %v93
    %v198 = vunpack.c.l.b16 %v94
    %v199 = vunpack.c.l.b16 %v95
    %v200 = vunpack.c.h.b16 %v95
    %v201 = vunpack.c.l.b16 %v96
    %v202 = vunpack.c.h.b16 %v96
    %v203 = vunpack.c.l.b16 %v97
    %v204 = vunpack.c.h.b16 %v97
    %v205 = vunpack.c.l.b16 %v98
    %v206 = vunpack.c.h.b16 %v98
    %v207 = vunpack.c.l.b16 %v99
    %v208 = vunpack.c.h.b16 %v99
    %v209 = vunpack.c.l.b16 %v100
    %v210 = vunpack.c.h.b16 %v100
    %v211 = vunpack.c.l.b16 %v101
    %v212 = vpack.c.b16 %v173, %v160
    %v213 = vpack.c.b16 %v174, %v161
    %v214 = vpack.c.b16 %v175, %v162
    %v215 = vpack.c.b16 %v176, %v163
    %v216 = vpack.c.b16 %v177, %v164
    %v217 = vpack.c.b16 %v178, %v165
    %v218 = vpack.c.b16 %v179, %v166
    %v219 = vpack.c.b16 %v180, %v167
    %v220 = vpack.c.b16 %v181, %v168
    %v221 = vpack.c.b16 %v182, %v169
    %v222 = vpack.c.b16 %v183, %v170
    %v223 = vpack.c.b16 %v184, %v171
    %v224 = vpack.c.b16 %v185, %v172
    %v225 = vpack.c.b16 %v199, %v186
    %v226 = vpack.c.b16 %v200, %v187
    %v227 = vpack.c.b16 %v201, %v188
    %v228 = vpack.c.b16 %v202, %v189
    %v229 = vpack.c.b16 %v203, %v190
    %v230 = vpack.c.b16 %v204, %v191
    %v231 = vpack.c.b16 %v205, %v192
    %v232 = vpack.c.b16 %v206, %v193
    %v233 = vpack.c.b16 %v207, %v194
    %v234 = vpack.c.b16 %v208, %v195
    %v235 = vpack.c.b16 %v209, %v196
    %v236 = vpack.c.b16 %v210, %v197
    %v237 = vpack.c.b16 %v211, %v198
    %vm264 = vcmask 261120
    %v266 = vsel %vm264, %v73, 0
    %268 = vmatpush.bf16.msra.mxu0 0
    %269 = vmatpush.bf16.msra.mxu0 0
    %270 = vmatpush.bf16.msra.mxu0 0
    %271 = vmatpush.bf16.msra.mxu0 0
    %272 = vmatpush.bf16.msra.mxu0 0
    %273 = vmatpush.bf16.msra.mxu0 0
    %274 = vmatpush.bf16.msra.mxu0 %v225
    %275 = vmatpush.bf16.msra.mxu0 %v212
    %276 = vmatmul.bf16.gmra.mxu0 %v266
    %v277 = vpop.f32.mrf.mxu0
    %v278 = vadd.f32 %v106, %v277
    %v279 = vpop.f32.mrf.mxu0
    %v280 = vadd.f32 %v106, %v279
    %281 = vdwg.mxu0
    %282 = vmatpush.bf16.msra.mxu0 0
    %283 = vmatpush.bf16.msra.mxu0 0
    %284 = vmatpush.bf16.msra.mxu0 0
    %285 = vmatpush.bf16.msra.mxu0 0
    %286 = vmatpush.bf16.msra.mxu0 0
    %287 = vmatpush.bf16.msra.mxu0 0
    %288 = vmatpush.bf16.msra.mxu0 %v226
    %289 = vmatpush.bf16.msra.mxu0 %v213
    %290 = vmatmul.bf16.gmra.mxu0 %v266
    %v291 = vpop.f32.mrf.mxu0
    %v292 = vadd.f32 %v107, %v291
    %v293 = vpop.f32.mrf.mxu0
    %v294 = vadd.f32 %v107, %v293
    %295 = vdwg.mxu0
    %296 = vmatpush.bf16.msra.mxu0 0
    %297 = vmatpush.bf16.msra.mxu0 0
    %298 = vmatpush.bf16.msra.mxu0 0
    %299 = vmatpush.bf16.msra.mxu0 0
    %300 = vmatpush.bf16.msra.mxu0 0
    %301 = vmatpush.bf16.msra.mxu0 0
    %302 = vmatpush.bf16.msra.mxu0 %v227
    %303 = vmatpush.bf16.msra.mxu0 %v214
    %304 = vmatmul.bf16.gmra.mxu0 %v266
    %v305 = vpop.f32.mrf.mxu0
    %v306 = vadd.f32 %v108, %v305
    %v307 = vpop.f32.mrf.mxu0
    %v308 = vadd.f32 %v108, %v307
    %309 = vdwg.mxu0
    %310 = vmatpush.bf16.msra.mxu0 0
    %311 = vmatpush.bf16.msra.mxu0 0
    %312 = vmatpush.bf16.msra.mxu0 0
    %313 = vmatpush.bf16.msra.mxu0 0
    %314 = vmatpush.bf16.msra.mxu0 0
    %315 = vmatpush.bf16.msra.mxu0 0
    %316 = vmatpush.bf16.msra.mxu0 %v228
    %317 = vmatpush.bf16.msra.mxu0 %v215
    %318 = vmatmul.bf16.gmra.mxu0 %v266
    %v319 = vpop.f32.mrf.mxu0
    %v320 = vadd.f32 %v109, %v319
    %v321 = vpop.f32.mrf.mxu0
    %v322 = vadd.f32 %v109, %v321
    %323 = vdwg.mxu0
    %324 = vmatpush.bf16.msra.mxu0 0
    %325 = vmatpush.bf16.msra.mxu0 0
    %326 = vmatpush.bf16.msra.mxu0 0
    %327 = vmatpush.bf16.msra.mxu0 0
    %328 = vmatpush.bf16.msra.mxu0 0
    %329 = vmatpush.bf16.msra.mxu0 0
    %330 = vmatpush.bf16.msra.mxu0 %v229
    %331 = vmatpush.bf16.msra.mxu0 %v216
    %332 = vmatmul.bf16.gmra.mxu0 %v266
    %v333 = vpop.f32.mrf.mxu0
    %v334 = vadd.f32 %v110, %v333
    %v335 = vpop.f32.mrf.mxu0
    %v336 = vadd.f32 %v110, %v335
    %337 = vdwg.mxu0
    %338 = vmatpush.bf16.msra.mxu0 0
    %339 = vmatpush.bf16.msra.mxu0 0
    %340 = vmatpush.bf16.msra.mxu0 0
    %341 = vmatpush.bf16.msra.mxu0 0
    %342 = vmatpush.bf16.msra.mxu0 0
    %343 = vmatpush.bf16.msra.mxu0 0
    %344 = vmatpush.bf16.msra.mxu0 %v230
    %345 = vmatpush.bf16.msra.mxu0 %v217
    %346 = vmatmul.bf16.gmra.mxu0 %v266
    %v347 = vpop.f32.mrf.mxu0
    %v348 = vadd.f32 %v111, %v347
    %v349 = vpop.f32.mrf.mxu0
    %v350 = vadd.f32 %v111, %v349
    %351 = vdwg.mxu0
    %352 = vmatpush.bf16.msra.mxu0 0
    %353 = vmatpush.bf16.msra.mxu0 0
    %354 = vmatpush.bf16.msra.mxu0 0
    %355 = vmatpush.bf16.msra.mxu0 0
    %356 = vmatpush.bf16.msra.mxu0 0
    %357 = vmatpush.bf16.msra.mxu0 0
    %358 = vmatpush.bf16.msra.mxu0 %v231
    %359 = vmatpush.bf16.msra.mxu0 %v218
    %360 = vmatmul.bf16.gmra.mxu0 %v266
    %v361 = vpop.f32.mrf.mxu0
    %v362 = vadd.f32 %v112, %v361
    %v363 = vpop.f32.mrf.mxu0
    %v364 = vadd.f32 %v112, %v363
    %365 = vdwg.mxu0
    %366 = vmatpush.bf16.msra.mxu0 0
    %367 = vmatpush.bf16.msra.mxu0 0
    %368 = vmatpush.bf16.msra.mxu0 0
    %369 = vmatpush.bf16.msra.mxu0 0
    %370 = vmatpush.bf16.msra.mxu0 0
    %371 = vmatpush.bf16.msra.mxu0 0
    %372 = vmatpush.bf16.msra.mxu0 %v232
    %373 = vmatpush.bf16.msra.mxu0 %v219
    %374 = vmatmul.bf16.gmra.mxu0 %v266
    %v375 = vpop.f32.mrf.mxu0
    %v376 = vadd.f32 %v113, %v375
    %v377 = vpop.f32.mrf.mxu0
    %v378 = vadd.f32 %v113, %v377
    %379 = vdwg.mxu0
    %380 = vmatpush.bf16.msra.mxu0 0
    %381 = vmatpush.bf16.msra.mxu0 0
    %382 = vmatpush.bf16.msra.mxu0 0
    %383 = vmatpush.bf16.msra.mxu0 0
    %384 = vmatpush.bf16.msra.mxu0 0
    %385 = vmatpush.bf16.msra.mxu0 0
    %386 = vmatpush.bf16.msra.mxu0 %v233
    %387 = vmatpush.bf16.msra.mxu0 %v220
    %388 = vmatmul.bf16.gmra.mxu0 %v266
    %v389 = vpop.f32.mrf.mxu0
    %v390 = vadd.f32 %v114, %v389
    %v391 = vpop.f32.mrf.mxu0
    %v392 = vadd.f32 %v114, %v391
    %393 = vdwg.mxu0
    %394 = vmatpush.bf16.msra.mxu0 0
    %395 = vmatpush.bf16.msra.mxu0 0
    %396 = vmatpush.bf16.msra.mxu0 0
    %397 = vmatpush.bf16.msra.mxu0 0
    %398 = vmatpush.bf16.msra.mxu0 0
    %399 = vmatpush.bf16.msra.mxu0 0
    %400 = vmatpush.bf16.msra.mxu0 %v234
    %401 = vmatpush.bf16.msra.mxu0 %v221
    %402 = vmatmul.bf16.gmra.mxu0 %v266
    %v403 = vpop.f32.mrf.mxu0
    %v404 = vadd.f32 %v115, %v403
    %v405 = vpop.f32.mrf.mxu0
    %v406 = vadd.f32 %v115, %v405
    %407 = vdwg.mxu0
    %408 = vmatpush.bf16.msra.mxu0 0
    %409 = vmatpush.bf16.msra.mxu0 0
    %410 = vmatpush.bf16.msra.mxu0 0
    %411 = vmatpush.bf16.msra.mxu0 0
    %412 = vmatpush.bf16.msra.mxu0 0
    %413 = vmatpush.bf16.msra.mxu0 0
    %414 = vmatpush.bf16.msra.mxu0 %v235
    %415 = vmatpush.bf16.msra.mxu0 %v222
    %416 = vmatmul.bf16.gmra.mxu0 %v266
    %v417 = vpop.f32.mrf.mxu0
    %v418 = vadd.f32 %v116, %v417
    %v419 = vpop.f32.mrf.mxu0
    %v420 = vadd.f32 %v116, %v419
    %421 = vdwg.mxu0
    %422 = vmatpush.bf16.msra.mxu0 0
    %423 = vmatpush.bf16.msra.mxu0 0
    %424 = vmatpush.bf16.msra.mxu0 0
    %425 = vmatpush.bf16.msra.mxu0 0
    %426 = vmatpush.bf16.msra.mxu0 0
    %427 = vmatpush.bf16.msra.mxu0 0
    %428 = vmatpush.bf16.msra.mxu0 %v236
    %429 = vmatpush.bf16.msra.mxu0 %v223
    %430 = vmatmul.bf16.gmra.mxu0 %v266
    %v431 = vpop.f32.mrf.mxu0
    %v432 = vadd.f32 %v117, %v431
    %v433 = vpop.f32.mrf.mxu0
    %v434 = vadd.f32 %v117, %v433
    %435 = vdwg.mxu0
    %436 = vmatpush.bf16.msra.mxu0 0
    %437 = vmatpush.bf16.msra.mxu0 0
    %438 = vmatpush.bf16.msra.mxu0 0
    %439 = vmatpush.bf16.msra.mxu0 0
    %440 = vmatpush.bf16.msra.mxu0 0
    %441 = vmatpush.bf16.msra.mxu0 0
    %442 = vmatpush.bf16.msra.mxu0 %v237
    %443 = vmatpush.bf16.msra.mxu0 %v224
    %444 = vmatmul.bf16.gmra.mxu0 %v266
    %v445 = vpop.f32.mrf.mxu0
    %v446 = vadd.f32 %v118, %v445
    %v447 = vpop.f32.mrf.mxu0
    %v448 = vadd.f32 %v118, %v447
    %449 = vdwg.mxu0
    %v450 = vmax.f32 %v278, 0.0
    %v451 = vmax.f32 %v280, 0.0
    %v452 = vand.u32 2147483647, %v278
    %v453 = vand.u32 2147483647, %v280
    %v454 = vsub.f32 0.0, %v452
    %v455 = vsub.f32 0.0, %v453
    %v456 = vmul.f32 %v454, 1.442695
    %v457 = vpow.pop %v456
    %v458 = vmul.f32 %v455, 1.442695
    %v459 = vpow.pop %v458
    %v460 = vadd.f32 %v457, 1.0
    %v461 = vlog2.pop %v460
    %v462 = vmul.f32 %v461, 0.6931472
    %v463 = vmul.f32 -0.5, %v457
    %v464 = vadd.f32 %v463, 1.0
    %v465 = vmul.f32 %v464, %v457
    %v466 = vand.u32 2147483647, %v457
    %vm467 = vcmp.lt.f32.partialorder %v466, 0.0004427343
    %v468 = vsel %vm467, %v465, %v462
    %v469 = vadd.f32 %v459, 1.0
    %v470 = vlog2.pop %v469
    %v471 = vmul.f32 %v470, 0.6931472
    %v472 = vmul.f32 -0.5, %v459
    %v473 = vadd.f32 %v472, 1.0
    %v474 = vmul.f32 %v473, %v459
    %v475 = vand.u32 2147483647, %v459
    %vm476 = vcmp.lt.f32.partialorder %v475, 0.0004427343
    %v477 = vsel %vm476, %v474, %v471
    %v478 = vadd.f32 %v450, %v468
    %v479 = vadd.f32 %v451, %v477
    %v480 = vmax.f32 %v478, 1e-07
    %v481 = vmax.f32 %v479, 1e-07
    %v482 = vmin.f32 %v480, 1000000.0
    %v483 = vmin.f32 %v481, 1000000.0
    %v484 = vpack.c.bf16 %v483, %v482
    %v485 = vld [vmem:[#allocation4] sm:$0xff]
    %v486 = vld [vmem:[#allocation4 + $0x8] sm:$0xff]
    %v487 = vld [vmem:[#allocation4 + $0x10] sm:$0xff]
    %v488 = vld [vmem:[#allocation4 + $0x18] sm:$0xff]
    %v489 = vld [vmem:[#allocation4 + $0x20] sm:$0xff]
    %v490 = vld [vmem:[#allocation4 + $0x28] sm:$0xff]
    %v491 = vld [vmem:[#allocation4 + $0x30] sm:$0xff]
    %v492 = vld [vmem:[#allocation4 + $0x38] sm:$0xff]
    %v501 = vunpack.c.l.b16 %v485
    %v502 = vunpack.c.h.b16 %v485
    %v503 = vunpack.c.l.b16 %v486
    %v504 = vunpack.c.h.b16 %v486
    %v505 = vunpack.c.l.b16 %v487
    %v506 = vunpack.c.h.b16 %v487
    %v507 = vunpack.c.l.b16 %v488
    %v508 = vunpack.c.h.b16 %v488
    %v509 = vunpack.c.l.b16 %v489
    %v510 = vunpack.c.h.b16 %v489
    %v511 = vunpack.c.l.b16 %v490
    %v512 = vunpack.c.h.b16 %v490
    %v513 = vunpack.c.l.b16 %v491
    %v514 = vunpack.c.h.b16 %v491
    %v515 = vunpack.c.l.b16 %v492
    %v516 = vunpack.c.h.b16 %v492
    %v517 = vpack.c.b16 %v505, %v501
    %v518 = vpack.c.b16 %v506, %v502
    %v519 = vpack.c.b16 %v507, %v503
    %v520 = vpack.c.b16 %v508, %v504
    %v521 = vpack.c.b16 %v513, %v509
    %v522 = vpack.c.b16 %v514, %v510
    %v523 = vpack.c.b16 %v515, %v511
    %v524 = vpack.c.b16 %v516, %v512
    %v534 = vsel %vm264, %v484, 0
    %536 = vmatpush.bf16.msra.mxu0 0
    %537 = vmatpush.bf16.msra.mxu0 0
    %538 = vmatpush.bf16.msra.mxu0 0
    %539 = vmatpush.bf16.msra.mxu0 0
    %540 = vmatpush.bf16.msra.mxu0 0
    %541 = vmatpush.bf16.msra.mxu0 0
    %542 = vmatpush.bf16.msra.mxu0 %v521
    %543 = vmatpush.bf16.msra.mxu0 %v517
    %544 = vmatmul.bf16.gmra.mxu0 %v534
    %v545 = vpop.f32.mrf.mxu0
    %v546 = vadd.f32 0.0, %v545
    %v547 = vpop.f32.mrf.mxu0
    %v548 = vadd.f32 0.0, %v547
    %549 = vdwg.mxu0
    %550 = vmatpush.bf16.msra.mxu0 0
    %551 = vmatpush.bf16.msra.mxu0 0
    %552 = vmatpush.bf16.msra.mxu0 0
    %553 = vmatpush.bf16.msra.mxu0 0
    %554 = vmatpush.bf16.msra.mxu0 0
    %555 = vmatpush.bf16.msra.mxu0 0
    %556 = vmatpush.bf16.msra.mxu0 %v522
    %557 = vmatpush.bf16.msra.mxu0 %v518
    %558 = vmatmul.bf16.gmra.mxu0 %v534
    %v559 = vpop.f32.mrf.mxu0
    %v560 = vadd.f32 0.0, %v559
    %v561 = vpop.f32.mrf.mxu0
    %v562 = vadd.f32 0.0, %v561
    %563 = vdwg.mxu0
    %564 = vmatpush.bf16.msra.mxu0 0
    %565 = vmatpush.bf16.msra.mxu0 0
    %566 = vmatpush.bf16.msra.mxu0 0
    %567 = vmatpush.bf16.msra.mxu0 0
    %568 = vmatpush.bf16.msra.mxu0 0
    %569 = vmatpush.bf16.msra.mxu0 0
    %570 = vmatpush.bf16.msra.mxu0 %v523
    %571 = vmatpush.bf16.msra.mxu0 %v519
    %572 = vmatmul.bf16.gmra.mxu0 %v534
    %v573 = vpop.f32.mrf.mxu0
    %v574 = vadd.f32 0.0, %v573
    %v575 = vpop.f32.mrf.mxu0
    %v576 = vadd.f32 0.0, %v575
    %577 = vdwg.mxu0
    %578 = vmatpush.bf16.msra.mxu0 0
    %579 = vmatpush.bf16.msra.mxu0 0
    %580 = vmatpush.bf16.msra.mxu0 0
    %581 = vmatpush.bf16.msra.mxu0 0
    %582 = vmatpush.bf16.msra.mxu0 0
    %583 = vmatpush.bf16.msra.mxu0 0
    %584 = vmatpush.bf16.msra.mxu0 %v524
    %585 = vmatpush.bf16.msra.mxu0 %v520
    %586 = vmatmul.bf16.gmra.mxu0 %v534
    %v587 = vpop.f32.mrf.mxu0
    %v588 = vadd.f32 0.0, %v587
    %v589 = vpop.f32.mrf.mxu0
    %v590 = vadd.f32 0.0, %v589
    %591 = vdwg.mxu0
    %v592 = vmul.f32 %v546, 1.442695
    %v593 = vpow.pop %v592
    %v594 = vmul.f32 %v560, 1.442695
    %v595 = vpow.pop %v594
    %v596 = vmul.f32 %v574, 1.442695
    %v597 = vpow.pop %v596
    %v598 = vmul.f32 %v588, 1.442695
    %v599 = vpow.pop %v598
    %v600 = vmul.f32 %v548, 1.442695
    %v601 = vpow.pop %v600
    %v602 = vmul.f32 %v562, 1.442695
    %v603 = vpow.pop %v602
    %v604 = vmul.f32 %v576, 1.442695
    %v605 = vpow.pop %v604
    %v606 = vmul.f32 %v590, 1.442695
    %v607 = vpow.pop %v606
    %v608 = vand.u32 2147483647, %v546
    %v609 = vand.u32 2147483647, %v560
    %v610 = vand.u32 2147483647, %v574
    %v611 = vand.u32 2147483647, %v588
    %v612 = vand.u32 2147483647, %v548
    %v613 = vand.u32 2147483647, %v562
    %v614 = vand.u32 2147483647, %v576
    %v615 = vand.u32 2147483647, %v590
    %vm616 = vcmp.lt.f32.partialorder %v608, 0.0001
    %vm617 = vcmp.lt.f32.partialorder %v609, 0.0001
    %vm618 = vcmp.lt.f32.partialorder %v610, 0.0001
    %vm619 = vcmp.lt.f32.partialorder %v611, 0.0001
    %vm620 = vcmp.lt.f32.partialorder %v612, 0.0001
    %vm621 = vcmp.lt.f32.partialorder %v613, 0.0001
    %vm622 = vcmp.lt.f32.partialorder %v614, 0.0001
    %vm623 = vcmp.lt.f32.partialorder %v615, 0.0001
    %v624 = vsub.f32 %v593, 1.0
    %v625 = vsub.f32 %v595, 1.0
    %v626 = vsub.f32 %v597, 1.0
    %v627 = vsub.f32 %v599, 1.0
    %v628 = vsub.f32 %v601, 1.0
    %v629 = vsub.f32 %v603, 1.0
    %v630 = vsub.f32 %v605, 1.0
    %v631 = vsub.f32 %v607, 1.0
    %v632 = vsel %vm616, %v546, %v624
    %v633 = vsel %vm617, %v560, %v625
    %v634 = vsel %vm618, %v574, %v626
    %v635 = vsel %vm619, %v588, %v627
    %v636 = vsel %vm620, %v548, %v628
    %v637 = vsel %vm621, %v562, %v629
    %v638 = vsel %vm622, %v576, %v630
    %v639 = vsel %vm623, %v590, %v631
    %v640 = vmul.f32 %v632, %v292
    %v641 = vmul.f32 %v633, %v306
    %v642 = vmul.f32 %v634, %v320
    %v643 = vmul.f32 %v635, %v334
    %v644 = vmul.f32 %v636, %v294
    %v645 = vmul.f32 %v637, %v308
    %v646 = vmul.f32 %v638, %v322
    %v647 = vmul.f32 %v639, %v336
    %v648 = vmul.f32 %v640, %v348
    %v649 = vmul.f32 %v641, %v362
    %v650 = vmul.f32 %v642, %v376
    %v651 = vmul.f32 %v643, %v390
    %v652 = vmul.f32 %v644, %v350
    %v653 = vmul.f32 %v645, %v364
    %v654 = vmul.f32 %v646, %v378
    %v655 = vmul.f32 %v647, %v392
    %v656 = vlaneseq
    %v657 = vshrl.u32 %v656, 7
    %vm658 = vcmp.lt.s32.totalorder %v657, 1
    %v659 = vrot.slane %v648, 7
    %v660 = vrot.slane %v649, 7
    %v661 = vrot.slane %v650, 7
    %v662 = vrot.slane %v651, 7
    %v663 = vsel %vm658, 0.0, %v659
    %v664 = vsel %vm658, 0.0, %v660
    %v665 = vsel %vm658, 0.0, %v661
    %v666 = vsel %vm658, 0.0, %v662
    %v667 = vmul.f32 %v593, %v663
    %v668 = vmul.f32 %v595, %v664
    %v669 = vmul.f32 %v597, %v665
    %v670 = vmul.f32 %v599, %v666
    %v671 = vadd.f32 %v667, %v648
    %v672 = vadd.f32 %v668, %v649
    %v673 = vadd.f32 %v669, %v650
    %v674 = vadd.f32 %v670, %v651
    %v675 = vrot.slane %v593, 7
    %v676 = vrot.slane %v595, 7
    %v677 = vrot.slane %v597, 7
    %v678 = vrot.slane %v599, 7
    %v679 = vsel %vm658, 1.0, %v675
    %v680 = vsel %vm658, 1.0, %v676
    %v681 = vsel %vm658, 1.0, %v677
    %v682 = vsel %vm658, 1.0, %v678
    %v683 = vmul.f32 %v593, %v679
    %v684 = vmul.f32 %v595, %v680
    %v685 = vmul.f32 %v597, %v681
    %v686 = vmul.f32 %v599, %v682
    %vm687 = vcmp.lt.s32.totalorder %v657, 2
    %v688 = vrot.slane %v671, 6
    %v689 = vrot.slane %v672, 6
    %v690 = vrot.slane %v673, 6
    %v691 = vrot.slane %v674, 6
    %v692 = vsel %vm687, 0.0, %v688
    %v693 = vsel %vm687, 0.0, %v689
    %v694 = vsel %vm687, 0.0, %v690
    %v695 = vsel %vm687, 0.0, %v691
    %v696 = vmul.f32 %v683, %v692
    %v697 = vmul.f32 %v684, %v693
    %v698 = vmul.f32 %v685, %v694
    %v699 = vmul.f32 %v686, %v695
    %v700 = vadd.f32 %v696, %v671
    %v701 = vadd.f32 %v697, %v672
    %v702 = vadd.f32 %v698, %v673
    %v703 = vadd.f32 %v699, %v674
    %v704 = vrot.slane %v683, 6
    %v705 = vrot.slane %v684, 6
    %v706 = vrot.slane %v685, 6
    %v707 = vrot.slane %v686, 6
    %v708 = vsel %vm687, 1.0, %v704
    %v709 = vsel %vm687, 1.0, %v705
    %v710 = vsel %vm687, 1.0, %v706
    %v711 = vsel %vm687, 1.0, %v707
    %v712 = vmul.f32 %v683, %v708
    %v713 = vmul.f32 %v684, %v709
    %v714 = vmul.f32 %v685, %v710
    %v715 = vmul.f32 %v686, %v711
    %vm716 = vcmp.lt.s32.totalorder %v657, 4
    %v717 = vrot.slane %v700, 4
    %v718 = vrot.slane %v701, 4
    %v719 = vrot.slane %v702, 4
    %v720 = vrot.slane %v703, 4
    %v721 = vsel %vm716, 0.0, %v717
    %v722 = vsel %vm716, 0.0, %v718
    %v723 = vsel %vm716, 0.0, %v719
    %v724 = vsel %vm716, 0.0, %v720
    %v725 = vmul.f32 %v712, %v721
    %v726 = vmul.f32 %v713, %v722
    %v727 = vmul.f32 %v714, %v723
    %v728 = vmul.f32 %v715, %v724
    %v729 = vadd.f32 %v725, %v700
    %v730 = vadd.f32 %v726, %v701
    %v731 = vadd.f32 %v727, %v702
    %v732 = vadd.f32 %v728, %v703
    %v733 = vrot.slane %v652, 7
    %v734 = vrot.slane %v653, 7
    %v735 = vrot.slane %v654, 7
    %v736 = vrot.slane %v655, 7
    %v737 = vsel %vm658, 0.0, %v733
    %v738 = vsel %vm658, 0.0, %v734
    %v739 = vsel %vm658, 0.0, %v735
    %v740 = vsel %vm658, 0.0, %v736
    %v741 = vmul.f32 %v601, %v737
    %v742 = vmul.f32 %v603, %v738
    %v743 = vmul.f32 %v605, %v739
    %v744 = vmul.f32 %v607, %v740
    %v745 = vadd.f32 %v741, %v652
    %v746 = vadd.f32 %v742, %v653
    %v747 = vadd.f32 %v743, %v654
    %v748 = vadd.f32 %v744, %v655
    %v749 = vrot.slane %v601, 7
    %v750 = vrot.slane %v603, 7
    %v751 = vrot.slane %v605, 7
    %v752 = vrot.slane %v607, 7
    %v753 = vsel %vm658, 1.0, %v749
    %v754 = vsel %vm658, 1.0, %v750
    %v755 = vsel %vm658, 1.0, %v751
    %v756 = vsel %vm658, 1.0, %v752
    %v757 = vmul.f32 %v601, %v753
    %v758 = vmul.f32 %v603, %v754
    %v759 = vmul.f32 %v605, %v755
    %v760 = vmul.f32 %v607, %v756
    %v761 = vrot.slane %v745, 6
    %v762 = vrot.slane %v746, 6
    %v763 = vrot.slane %v747, 6
    %v764 = vrot.slane %v748, 6
    %v765 = vsel %vm687, 0.0, %v761
    %v766 = vsel %vm687, 0.0, %v762
    %v767 = vsel %vm687, 0.0, %v763
    %v768 = vsel %vm687, 0.0, %v764
    %v769 = vmul.f32 %v757, %v765
    %v770 = vmul.f32 %v758, %v766
    %v771 = vmul.f32 %v759, %v767
    %v772 = vmul.f32 %v760, %v768
    %v773 = vadd.f32 %v769, %v745
    %v774 = vadd.f32 %v770, %v746
    %v775 = vadd.f32 %v771, %v747
    %v776 = vadd.f32 %v772, %v748
    %v777 = vrot.slane %v757, 6
    %v778 = vrot.slane %v758, 6
    %v779 = vrot.slane %v759, 6
    %v780 = vrot.slane %v760, 6
    %v781 = vsel %vm687, 1.0, %v777
    %v782 = vsel %vm687, 1.0, %v778
    %v783 = vsel %vm687, 1.0, %v779
    %v784 = vsel %vm687, 1.0, %v780
    %v785 = vmul.f32 %v757, %v781
    %v786 = vmul.f32 %v758, %v782
    %v787 = vmul.f32 %v759, %v783
    %v788 = vmul.f32 %v760, %v784
    %v789 = vrot.slane %v773, 4
    %v790 = vrot.slane %v774, 4
    %v791 = vrot.slane %v775, 4
    %v792 = vrot.slane %v776, 4
    %v793 = vsel %vm716, 0.0, %v789
    %v794 = vsel %vm716, 0.0, %v790
    %v795 = vsel %vm716, 0.0, %v791
    %v796 = vsel %vm716, 0.0, %v792
    %v797 = vmul.f32 %v785, %v793
    %v798 = vmul.f32 %v786, %v794
    %v799 = vmul.f32 %v787, %v795
    %v800 = vmul.f32 %v788, %v796
    %v801 = vadd.f32 %v797, %v773
    %v802 = vadd.f32 %v798, %v774
    %v803 = vadd.f32 %v799, %v775
    %v804 = vadd.f32 %v800, %v776
    %v805 = vmul.f32 %v729, %v404
    %v806 = vmul.f32 %v730, %v418
    %v807 = vmul.f32 %v731, %v432
    %v808 = vmul.f32 %v732, %v446
    %v809 = vmul.f32 %v801, %v406
    %v810 = vmul.f32 %v802, %v420
    %v811 = vmul.f32 %v803, %v434
    %v812 = vmul.f32 %v804, %v448
    %v813 = vpack.c.bf16 %v809, %v805
    %v814 = vpack.c.bf16 %v810, %v806
    %v815 = vpack.c.bf16 %v811, %v807
    %v816 = vpack.c.bf16 %v812, %v808
    %v817 = vld [vmem:[#allocation6] sm:$0xf]
    %v818 = vld [vmem:[#allocation6 + $0x4] sm:$0xf]
    %v819 = vld [vmem:[#allocation6 + $0x8] sm:$0xf]
    %v820 = vld [vmem:[#allocation6 + $0xc] sm:$0xf]
    %v821 = vld [vmem:[#allocation6 + $0x10] sm:$0xf]
    %v822 = vld [vmem:[#allocation6 + $0x14] sm:$0xf]
    %v823 = vld [vmem:[#allocation6 + $0x18] sm:$0xf]
    %v824 = vld [vmem:[#allocation6 + $0x1c] sm:$0xf]
    %v825 = vld [vmem:[#allocation6 + $0x20] sm:$0xf]
    %v826 = vld [vmem:[#allocation6 + $0x24] sm:$0xf]
    %v827 = vld [vmem:[#allocation6 + $0x28] sm:$0xf]
    %v828 = vld [vmem:[#allocation6 + $0x2c] sm:$0xf]
    %v829 = vld [vmem:[#allocation6 + $0x30] sm:$0xf]
    %v830 = vld [vmem:[#allocation6 + $0x34] sm:$0xf]
    %v831 = vld [vmem:[#allocation6 + $0x38] sm:$0xf]
    %v832 = vld [vmem:[#allocation6 + $0x3c] sm:$0xf]
    %v833 = vld [vmem:[#allocation6 + $0x40] sm:$0xf]
    %v834 = vld [vmem:[#allocation6 + $0x44] sm:$0xf]
    %v835 = vld [vmem:[#allocation6 + $0x48] sm:$0xf]
    %v836 = vld [vmem:[#allocation6 + $0x4c] sm:$0xf]
    %v837 = vld [vmem:[#allocation6 + $0x50] sm:$0xf]
    %v838 = vld [vmem:[#allocation6 + $0x54] sm:$0xf]
    %v839 = vld [vmem:[#allocation6 + $0x58] sm:$0xf]
    %v840 = vld [vmem:[#allocation6 + $0x5c] sm:$0xf]
    %v841 = vld [vmem:[#allocation6 + $0x60] sm:$0xf]
    %v842 = vld [vmem:[#allocation6 + $0x64] sm:$0xf]
    %v843 = vld [vmem:[#allocation6 + $0x68] sm:$0xf]
    %v844 = vld [vmem:[#allocation6 + $0x6c] sm:$0xf]
    %v845 = vld [vmem:[#allocation6 + $0x70] sm:$0xf]
    %v846 = vld [vmem:[#allocation6 + $0x74] sm:$0xf]
    %v847 = vld [vmem:[#allocation6 + $0x78] sm:$0xf]
    %v848 = vld [vmem:[#allocation6 + $0x7c] sm:$0xf]
    %v849 = vld [vmem:[#allocation6 + $0x80] sm:$0xf]
    %v850 = vld [vmem:[#allocation6 + $0x84] sm:$0xf]
    %v851 = vld [vmem:[#allocation6 + $0x88] sm:$0xf]
    %v852 = vld [vmem:[#allocation6 + $0x8c] sm:$0xf]
    %v853 = vld [vmem:[#allocation6 + $0x90] sm:$0xf]
    %v854 = vld [vmem:[#allocation6 + $0x94] sm:$0xf]
    %v855 = vld [vmem:[#allocation6 + $0x98] sm:$0xf]
    %v856 = vld [vmem:[#allocation6 + $0x9c] sm:$0xf]
    %v857 = vld [vmem:[#allocation6 + $0xa0] sm:$0xf]
    %v858 = vld [vmem:[#allocation6 + $0xa4] sm:$0xf]
    %v859 = vld [vmem:[#allocation6 + $0xa8] sm:$0xf]
    %v860 = vld [vmem:[#allocation6 + $0xac] sm:$0xf]
    %v861 = vld [vmem:[#allocation6 + $0xb0] sm:$0xf]
    %v862 = vld [vmem:[#allocation6 + $0xb4] sm:$0xf]
    %v863 = vld [vmem:[#allocation6 + $0xb8] sm:$0xf]
    %v864 = vld [vmem:[#allocation6 + $0xbc] sm:$0xf]
    %v865 = vld [vmem:[#allocation6 + $0xc0] sm:$0xf]
    %v866 = vld [vmem:[#allocation6 + $0xc4] sm:$0xf]
    %v867 = vld [vmem:[#allocation6 + $0xc8] sm:$0xf]
    %v868 = vld [vmem:[#allocation6 + $0xcc] sm:$0xf]
    %v869 = vld [vmem:[#allocation6 + $0xd0] sm:$0xf]
    %v870 = vld [vmem:[#allocation6 + $0xd4] sm:$0xf]
    %v871 = vld [vmem:[#allocation6 + $0xd8] sm:$0xf]
    %v872 = vld [vmem:[#allocation6 + $0xdc] sm:$0xf]
    %v873 = vld [vmem:[#allocation6 + $0xe0] sm:$0xf]
    %v874 = vld [vmem:[#allocation6 + $0xe4] sm:$0xf]
    %v875 = vld [vmem:[#allocation6 + $0xe8] sm:$0xf]
    %v876 = vld [vmem:[#allocation6 + $0xec] sm:$0xf]
    %v877 = vld [vmem:[#allocation6 + $0xf0] sm:$0xf]
    %v878 = vld [vmem:[#allocation6 + $0xf4] sm:$0xf]
    %v879 = vld [vmem:[#allocation6 + $0xf8] sm:$0xf]
    %v880 = vld [vmem:[#allocation6 + $0xfc] sm:$0xf]
    %v881 = vld [vmem:[%s5] sm:$0x1]
    %v883 = vperm.slane %v881, 0
    %v885 = vmul.f32 %v883, %v71
    %v886 = vmul.f32 %v883, %v72
    %v951 = vunpack.c.l.b16 %v817
    %v952 = vunpack.c.l.b16 %v818
    %v953 = vunpack.c.l.b16 %v819
    %v954 = vunpack.c.l.b16 %v820
    %v955 = vunpack.c.l.b16 %v821
    %v956 = vunpack.c.l.b16 %v822
    %v957 = vunpack.c.l.b16 %v823
    %v958 = vunpack.c.l.b16 %v824
    %v959 = vunpack.c.l.b16 %v825
    %v960 = vunpack.c.l.b16 %v826
    %v961 = vunpack.c.l.b16 %v827
    %v962 = vunpack.c.l.b16 %v828
    %v963 = vunpack.c.l.b16 %v829
    %v964 = vunpack.c.l.b16 %v830
    %v965 = vunpack.c.l.b16 %v831
    %v966 = vunpack.c.l.b16 %v832
    %v967 = vunpack.c.l.b16 %v833
    %v968 = vunpack.c.l.b16 %v834
    %v969 = vunpack.c.l.b16 %v835
    %v970 = vunpack.c.l.b16 %v836
    %v971 = vunpack.c.l.b16 %v837
    %v972 = vunpack.c.l.b16 %v838
    %v973 = vunpack.c.l.b16 %v839
    %v974 = vunpack.c.l.b16 %v840
    %v975 = vunpack.c.l.b16 %v841
    %v976 = vunpack.c.l.b16 %v842
    %v977 = vunpack.c.l.b16 %v843
    %v978 = vunpack.c.l.b16 %v844
    %v979 = vunpack.c.l.b16 %v845
    %v980 = vunpack.c.l.b16 %v846
    %v981 = vunpack.c.l.b16 %v847
    %v982 = vunpack.c.l.b16 %v848
    %v983 = vunpack.c.l.b16 %v849
    %v984 = vunpack.c.l.b16 %v850
    %v985 = vunpack.c.l.b16 %v851
    %v986 = vunpack.c.l.b16 %v852
    %v987 = vunpack.c.l.b16 %v853
    %v988 = vunpack.c.l.b16 %v854
    %v989 = vunpack.c.l.b16 %v855
    %v990 = vunpack.c.l.b16 %v856
    %v991 = vunpack.c.l.b16 %v857
    %v992 = vunpack.c.l.b16 %v858
    %v993 = vunpack.c.l.b16 %v859
    %v994 = vunpack.c.l.b16 %v860
    %v995 = vunpack.c.l.b16 %v861
    %v996 = vunpack.c.l.b16 %v862
    %v997 = vunpack.c.l.b16 %v863
    %v998 = vunpack.c.l.b16 %v864
    %v999 = vunpack.c.l.b16 %v865
    %v1000 = vunpack.c.l.b16 %v866
    %v1001 = vunpack.c.l.b16 %v867
    %v1002 = vunpack.c.l.b16 %v868
    %v1003 = vunpack.c.l.b16 %v869
    %v1004 = vunpack.c.l.b16 %v870
    %v1005 = vunpack.c.l.b16 %v871
    %v1006 = vunpack.c.l.b16 %v872
    %v1007 = vunpack.c.l.b16 %v873
    %v1008 = vunpack.c.l.b16 %v874
    %v1009 = vunpack.c.l.b16 %v875
    %v1010 = vunpack.c.l.b16 %v876
    %v1011 = vunpack.c.l.b16 %v877
    %v1012 = vunpack.c.l.b16 %v878
    %v1013 = vunpack.c.l.b16 %v879
    %v1014 = vunpack.c.l.b16 %v880
    %v1015 = vpack.c.b16 %v952, %v951
    %v1016 = vpack.c.b16 %v954, %v953
    %v1017 = vpack.c.b16 %v956, %v955
    %v1018 = vpack.c.b16 %v958, %v957
    %v1019 = vpack.c.b16 %v960, %v959
    %v1020 = vpack.c.b16 %v962, %v961
    %v1021 = vpack.c.b16 %v964, %v963
    %v1022 = vpack.c.b16 %v966, %v965
    %v1023 = vpack.c.b16 %v968, %v967
    %v1024 = vpack.c.b16 %v970, %v969
    %v1025 = vpack.c.b16 %v972, %v971
    %v1026 = vpack.c.b16 %v974, %v973
    %v1027 = vpack.c.b16 %v976, %v975
    %v1028 = vpack.c.b16 %v978, %v977
    %v1029 = vpack.c.b16 %v980, %v979
    %v1030 = vpack.c.b16 %v982, %v981
    %v1031 = vpack.c.b16 %v984, %v983
    %v1032 = vpack.c.b16 %v986, %v985
    %v1033 = vpack.c.b16 %v988, %v987
    %v1034 = vpack.c.b16 %v990, %v989
    %v1035 = vpack.c.b16 %v992, %v991
    %v1036 = vpack.c.b16 %v994, %v993
    %v1037 = vpack.c.b16 %v996, %v995
    %v1038 = vpack.c.b16 %v998, %v997
    %v1039 = vpack.c.b16 %v1000, %v999
    %v1040 = vpack.c.b16 %v1002, %v1001
    %v1041 = vpack.c.b16 %v1004, %v1003
    %v1042 = vpack.c.b16 %v1006, %v1005
    %v1043 = vpack.c.b16 %v1008, %v1007
    %v1044 = vpack.c.b16 %v1010, %v1009
    %v1045 = vpack.c.b16 %v1012, %v1011
    %v1046 = vpack.c.b16 %v1014, %v1013
    %1079 = vmatpush.bf16.msra.mxu0 %v1022
    %1080 = vmatpush.bf16.msra.mxu0 %v1021
    %1081 = vmatpush.bf16.msra.mxu0 %v1020
    %1082 = vmatpush.bf16.msra.mxu0 %v1019
    %1083 = vmatpush.bf16.msra.mxu0 %v1018
    %1084 = vmatpush.bf16.msra.mxu0 %v1017
    %1085 = vmatpush.bf16.msra.mxu0 %v1016
    %1086 = vmatpush.bf16.msra.mxu0 %v1015
    %1087 = vmatmul.bf16.gmra.mxu0 %v813
    %v1088 = vpop.f32.mrf.mxu0
    %v1089 = vadd.f32 %v885, %v1088
    %v1090 = vpop.f32.mrf.mxu0
    %v1091 = vadd.f32 %v886, %v1090
    %1092 = vdwg.mxu0
    %1093 = vmatpush.bf16.msra.mxu0 %v1030
    %1094 = vmatpush.bf16.msra.mxu0 %v1029
    %1095 = vmatpush.bf16.msra.mxu0 %v1028
    %1096 = vmatpush.bf16.msra.mxu0 %v1027
    %1097 = vmatpush.bf16.msra.mxu0 %v1026
    %1098 = vmatpush.bf16.msra.mxu0 %v1025
    %1099 = vmatpush.bf16.msra.mxu0 %v1024
    %1100 = vmatpush.bf16.msra.mxu0 %v1023
    %1101 = vmatmul.bf16.gmra.mxu0 %v814
    %v1102 = vpop.f32.mrf.mxu0
    %v1103 = vadd.f32 %v1089, %v1102
    %v1104 = vpop.f32.mrf.mxu0
    %v1105 = vadd.f32 %v1091, %v1104
    %1106 = vdwg.mxu0
    %1107 = vmatpush.bf16.msra.mxu0 %v1038
    %1108 = vmatpush.bf16.msra.mxu0 %v1037
    %1109 = vmatpush.bf16.msra.mxu0 %v1036
    %1110 = vmatpush.bf16.msra.mxu0 %v1035
    %1111 = vmatpush.bf16.msra.mxu0 %v1034
    %1112 = vmatpush.bf16.msra.mxu0 %v1033
    %1113 = vmatpush.bf16.msra.mxu0 %v1032
    %1114 = vmatpush.bf16.msra.mxu0 %v1031
    %1115 = vmatmul.bf16.gmra.mxu0 %v815
    %v1116 = vpop.f32.mrf.mxu0
    %v1117 = vadd.f32 %v1103, %v1116
    %v1118 = vpop.f32.mrf.mxu0
    %v1119 = vadd.f32 %v1105, %v1118
    %1120 = vdwg.mxu0
    %1121 = vmatpush.bf16.msra.mxu0 %v1046
    %1122 = vmatpush.bf16.msra.mxu0 %v1045
    %1123 = vmatpush.bf16.msra.mxu0 %v1044
    %1124 = vmatpush.bf16.msra.mxu0 %v1043
    %1125 = vmatpush.bf16.msra.mxu0 %v1042
    %1126 = vmatpush.bf16.msra.mxu0 %v1041
    %1127 = vmatpush.bf16.msra.mxu0 %v1040
    %1128 = vmatpush.bf16.msra.mxu0 %v1039
    %1129 = vmatmul.bf16.gmra.mxu0 %v816
    %v1130 = vpop.f32.mrf.mxu0
    %v1131 = vadd.f32 %v1117, %v1130
    %v1132 = vpop.f32.mrf.mxu0
    %v1133 = vadd.f32 %v1119, %v1132
    %1134 = vdwg.mxu0
    %1135 = vst [vmem:[%s6] sm:$0xff] %v1131
    %1136 = vst [vmem:[%s6 + $0x8] sm:$0xff] %v1133
    // Predicated region
    $region38: #{s6_forward.1} parent=1 // pred_check
      _
    $region39: #{s6_forward.1} parent=1 // pred_check_branch
      %1138 = sbr.rel (0) target = $region41
    $region40: #{s6_forward.1} parent=1 // pred_region
      _
    $region41: #{s6_forward.1} parent=1 // pred_fallthru
      _
    // Predicated region
    $region42: #{s6_forward.1} parent=1 // pred_check
      _
    $region43: #{s6_forward.1} parent=1 // pred_check_branch
      %1140 = sbr.rel (0) target = $region45
    $region44: #{s6_forward.1} parent=1 // pred_region
      _
    $region45: #{s6_forward.1} parent=1 // pred_fallthru
      _
    %1141 = vsyncpa [#allocation3], 1
    %1142 = vsyncpa [#allocation5], 1

</llo_original>
